<compile_context>
chip_gen: v5e
topology: v5e:2x2
jax: 0.10.0
libtpu: 0.0.40
codegen_flags: <defaults>
</compile_context>

<pallas_src>
import functools
import math

import jax
import jax.numpy as jnp
from jax.experimental import pallas as pl
from jax.experimental.pallas import tpu as pltpu

_LANE = 128
_SUBLANE = 8


def _ntxent_kernel(q_ref, k_ref, out_ref, den_acc, pos_acc, *,
                   inv_temperature, batch_size, rows_per_tile, cols_per_tile):
    """Grid cell (i, j): query-row tile i against key-row tile j.

    q_ref:   (TR, D)    L2-normalized query rows (native dtype)
    k_ref:   (TC, D)    L2-normalized key rows (native dtype)
    out_ref: (1, 1, 1)  un-normalized partial loss for row tile i
    den_acc: (TR, 1)    running sum_cols exp(logits)      (f32 scratch)
    pos_acc: (TR, 1)    running positive-pair logit       (f32 scratch)
    """
    j = pl.program_id(1)

    @pl.when(j == 0)
    def _():
        den_acc[...] = jnp.zeros_like(den_acc)
        pos_acc[...] = jnp.zeros_like(pos_acc)

    # MXU contraction over D in the inputs' native dtype, f32 accumulation.
    sim = jax.lax.dot_general(
        q_ref[...], k_ref[...],
        dimension_numbers=(((1,), (1,)), ((), ())),
        preferred_element_type=jnp.float32)
    logits = sim * inv_temperature                          # (TR, TC) f32

    row0 = pl.program_id(0) * rows_per_tile
    col0 = j * cols_per_tile
    rows = row0 + jax.lax.broadcasted_iota(jnp.int32, (rows_per_tile, 1), 0)
    pos_cols = jnp.where(rows < batch_size, rows + batch_size,
                         rows - batch_size)                 # (TR, 1)
    cols = col0 + jax.lax.broadcasted_iota(jnp.int32, logits.shape, 1)

    # Denominator accumulates ALL columns; the self-similarity term is
    # removed once at the end (diag logit of a normalized row == 1/T exactly,
    # up to matmul rounding, so exp(1/T) is a compile-time constant).
    # TODO(synk): no log-sum-exp stabilization -- safe because |logit| <= 1/T.
    den_acc[...] += jnp.sum(jnp.exp(logits), axis=-1, keepdims=True)
    # Positive column of global row r is (r + B) mod 2B; it lands in exactly
    # one column tile, so accumulating the masked sum across j is exact.
    pos_acc[...] += jnp.sum(jnp.where(cols == pos_cols, logits, 0.0),
                            axis=-1, keepdims=True)

    @pl.when(j == pl.num_programs(1) - 1)
    def _():
        den = den_acc[...] - math.exp(inv_temperature)
        out_ref[...] = jnp.sum(jnp.log(den) - pos_acc[...]).reshape(1, 1, 1)


def _vmem_estimate(tr, tc, dim, itemsize):
    # 2x double-buffered query/key tiles + ~6 live (TR,TC) f32/i32 temporaries
    # (sim, logits, exp, col iota, compare, select) + lane-padded accumulators.
    return (2 * tr * dim * itemsize + 2 * tc * dim * itemsize
            + 6 * tr * tc * 4 + 2 * tr * _LANE * 4 + 4096)


def _pick_tiles(n_rows, dim, itemsize, vmem_budget):
    if n_rows % _SUBLANE != 0:
        row_cands = [n_rows]
    else:
        row_cands = [t for t in (1024, 512, 256, 128, 64, 32, 16, 8)
                     if t <= n_rows and n_rows % t == 0] or [n_rows]
    # Prefer no column tiling (full key block resident); shrink if needed.
    col_cands = [n_rows] + [t for t in (2048, 1024, 512, 256, 128)
                            if t < n_rows and n_rows % t == 0]
    # First pass insists on >=2 row tiles so the "parallel" axis can split
    # across the two TensorCores of a v7x chip; then fall back to one tile.
    for min_row_tiles in (2, 1):
        for tr in row_cands:
            if n_rows // tr < min_row_tiles:
                continue
            for tc in col_cands:
                if _vmem_estimate(tr, tc, dim, itemsize) <= vmem_budget:
                    return tr, tc
    return row_cands[-1], col_cands[-1]


def contrastive_loss(emb_i, emb_j, temperature=0.5, *,
                     rows_per_tile=None, cols_per_tile=None):
    """Functional equivalent of ContrastiveLoss.forward (NT-Xent)."""
    assert emb_i.shape == emb_j.shape and emb_i.ndim == 2
    batch_size, dim = emb_i.shape
    n_rows = 2 * batch_size

    # Normalize ONCE in the wrapper (in f32), then cast back to the native
    # dtype so the in-kernel matmul is bf16-native for bf16 inputs and the
    # key tiles are never re-normalized per grid step.
    reps = jnp.concatenate([emb_i, emb_j], axis=0)          # (2B, D)
    reps_f32 = reps.astype(jnp.float32)
    inv_norm = jax.lax.rsqrt(
        jnp.sum(reps_f32 * reps_f32, axis=1, keepdims=True) + 1e-12)
    reps_n = (reps_f32 * inv_norm).astype(reps.dtype)

    itemsize = jnp.dtype(reps.dtype).itemsize

    # Generation-aware VMEM budget (v7x has only 64 MiB per TensorCore).
    try:
        phys_vmem = int(pltpu.get_tpu_info().vmem_capacity_bytes)
    except Exception:
        phys_vmem = 64 * 1024 * 1024   # conservative fallback: v7x per-TC
    vmem_cap = min(int(phys_vmem * 3 // 4), 112 * 1024 * 1024)

    auto_tr, auto_tc = _pick_tiles(n_rows, dim, itemsize, vmem_cap)
    tr = rows_per_tile if rows_per_tile is not None else auto_tr
    tc = cols_per_tile if cols_per_tile is not None else auto_tc
    assert n_rows % tr == 0 and n_rows % tc == 0
    assert tr == n_rows or tr % _SUBLANE == 0
    assert tc == n_rows or tc % _SUBLANE == 0
    num_row_tiles = n_rows // tr
    num_col_tiles = n_rows // tc

    kernel = functools.partial(
        _ntxent_kernel,
        inv_temperature=1.0 / float(temperature),
        batch_size=batch_size,
        rows_per_tile=tr,
        cols_per_tile=tc,
    )

    compiler_kwargs = dict(dimension_semantics=("parallel", "arbitrary"))
    est = _vmem_estimate(tr, tc, dim, itemsize)
    # v5e's default scoped limit is ~16 MiB (32 MiB v6e/v7x): raise it when
    # the working set could exceed the smallest default, never above the
    # per-generation cap computed above.
    if est > 12 * 1024 * 1024:
        compiler_kwargs["vmem_limit_bytes"] = int(
            min(max(2 * est, 32 * 1024 * 1024), vmem_cap))

    partials = pl.pallas_call(
        kernel,
        grid=(num_row_tiles, num_col_tiles),
        in_specs=[
            pl.BlockSpec((tr, dim), lambda i, j: (i, 0)),   # query row tile
            pl.BlockSpec((tc, dim), lambda i, j: (j, 0)),   # key row tile
        ],
        out_specs=pl.BlockSpec((1, 1, 1), lambda i, j: (i, 0, 0)),
        out_shape=jax.ShapeDtypeStruct((num_row_tiles, 1, 1), jnp.float32),
        scratch_shapes=[pltpu.VMEM((tr, 1), jnp.float32),
                        pltpu.VMEM((tr, 1), jnp.float32)],
        compiler_params=pltpu.CompilerParams(**compiler_kwargs),
    )(reps_n, reps_n)

    # Tiny cross-tile reduction + the 1/(2B) normalization of the reference.
    return jnp.sum(partials) / n_rows


if __name__ == "__main__":
    key = jax.random.PRNGKey(0)
    temperature = 0.5

    # Pure-JAX reference mirroring the PyTorch forward.
    def _ref(emb_i, emb_j, temperature):
        z_i = emb_i / jnp.linalg.norm(emb_i, axis=1, keepdims=True)
        z_j = emb_j / jnp.linalg.norm(emb_j, axis=1, keepdims=True)
        reps = jnp.concatenate([z_i, z_j], axis=0)
        n = reps.shape[0]
        b = emb_i.shape[0]
        sim = reps @ reps.T
        positives = jnp.concatenate(
            [jnp.diagonal(sim, b), jnp.diagonal(sim, -b)], axis=0)
        mask = (~jnp.eye(n, dtype=bool)).astype(jnp.float32)
        nom = jnp.exp(positives / temperature)
        den = jnp.sum(mask * jnp.exp(sim / temperature), axis=1)
        return jnp.sum(-jnp.log(nom / den)) / n

    # --- small demo consistent with the module: batch=8, embedding dim=32 ---
    B, D = 8, 32
    k1, k2 = jax.random.split(key)
    emb_i = jax.random.normal(k1, (B, D), dtype=jnp.float32)
    emb_j = jax.random.normal(k2, (B, D), dtype=jnp.float32)

    loss = contrastive_loss(emb_i, emb_j, temperature)
    jax.block_until_ready(loss)

    ref = _ref(emb_i, emb_j, temperature)
    assert jnp.allclose(loss, ref, rtol=1e-2, atol=1e-2), (loss, ref)

    # --- second case exercising both row tiling AND key/column tiling ---
    B2, D2 = 256, 128
    k3, k4 = jax.random.split(k2)
    emb_i2 = jax.random.normal(k3, (B2, D2), dtype=jnp.float32)
    emb_j2 = jax.random.normal(k4, (B2, D2), dtype=jnp.float32)

    loss2 = contrastive_loss(emb_i2, emb_j2, temperature,
                             rows_per_tile=128, cols_per_tile=256)
    jax.block_until_ready(loss2)

    ref2 = _ref(emb_i2, emb_j2, temperature)
    assert jnp.allclose(loss2, ref2, rtol=1e-2, atol=1e-2), (loss2, ref2)

    print("KERNEL_OK")
</pallas_src>

<mosaic_0001>
module attributes {stable_mosaic.version = 11 : i64} {
  func.func @_ntxent_kernel(%arg0: i32, %arg1: i32, %arg2: memref<8x32xf32, #tpu.memory_space<vmem>>, %arg3: memref<16x32xf32, #tpu.memory_space<vmem>>, %arg4: memref<1x1x1xf32, #tpu.memory_space<vmem>>, %arg5: memref<8x1xf32, #tpu.memory_space<vmem>>, %arg6: memref<8x1xf32, #tpu.memory_space<vmem>>) attributes {dimension_semantics = [#tpu.dimension_semantics<parallel>, #tpu.dimension_semantics<arbitrary>], iteration_bounds = array<i64: 2, 1>, scalar_prefetch = 0 : i64, scratch_operands = 2 : i64, tpu.core_type = #tpu.core_type<tc>, window_params = [{transform_indices = @transform_0, window_bounds = array<i64: 8, 32>}, {transform_indices = @transform_1, window_bounds = array<i64: 16, 32>}, {transform_indices = @transform_2, window_bounds = array<i64: 1, 1, 1>}]} {
    %c0_i32 = arith.constant 0 : i32
    %0 = arith.cmpi eq, %arg1, %c0_i32 : i32
    %1 = arith.extui %0 : i1 to i32
    %c0_i32_0 = arith.constant 0 : i32
    %2 = arith.cmpi ne, %1, %c0_i32_0 : i32
    scf.if %2 {
      %cst_21 = arith.constant 0.000000e+00 : f32
      %41 = vector.broadcast %cst_21 : f32 to vector<8x1xf32>
      %c0_22 = arith.constant 0 : index
      %c0_23 = arith.constant 0 : index
      %42 = vector.load %arg5[%c0_22, %c0_23] : memref<8x1xf32, #tpu.memory_space<vmem>>, vector<8x1xf32>
      tpu.vector_store %arg5[%c0_22, %c0_23], %41 {strides = array<i32>} : memref<8x1xf32, #tpu.memory_space<vmem>>, vector<8x1xf32>,
      %cst_24 = arith.constant 0.000000e+00 : f32
      %43 = vector.broadcast %cst_24 : f32 to vector<8x1xf32>
      %c0_25 = arith.constant 0 : index
      %c0_26 = arith.constant 0 : index
      %44 = vector.load %arg6[%c0_25, %c0_26] : memref<8x1xf32, #tpu.memory_space<vmem>>, vector<8x1xf32>
      tpu.vector_store %arg6[%c0_25, %c0_26], %43 {strides = array<i32>} : memref<8x1xf32, #tpu.memory_space<vmem>>, vector<8x1xf32>,
    } else {
    }
    %c0 = arith.constant 0 : index
    %c0_1 = arith.constant 0 : index
    %3 = vector.load %arg2[%c0, %c0_1] : memref<8x32xf32, #tpu.memory_space<vmem>>, vector<8x32xf32>
    %c0_2 = arith.constant 0 : index
    %c0_3 = arith.constant 0 : index
    %4 = vector.load %arg3[%c0_2, %c0_3] : memref<16x32xf32, #tpu.memory_space<vmem>>, vector<16x32xf32>
    %cst = arith.constant dense<0.000000e+00> : vector<8x16xf32>
    %5 = tpu.matmul %3, %4, %cst {dimension_numbers = #tpu.dot_dimension_numbers<[1], [1], [0], [0], [0, 0, 1, 0], [], []>} : vector<8x32xf32>, vector<16x32xf32>, vector<8x16xf32> -> vector<8x16xf32>
    %cst_4 = arith.constant 2.000000e+00 : f32
    %6 = vector.broadcast %cst_4 : f32 to vector<8x16xf32>
    %7 = arith.mulf %5, %6 : vector<8x16xf32>
    %c8_i32 = arith.constant 8 : i32
    %8 = arith.muli %arg0, %c8_i32 : i32
    %c16_i32 = arith.constant 16 : i32
    %9 = arith.muli %arg1, %c16_i32 : i32
    %10 = tpu.iota {dimensions = array<i32: 0>} : vector<8x1xi32>
    %11 = vector.broadcast %8 : i32 to vector<8x1xi32>
    %12 = arith.addi %11, %10 : vector<8x1xi32>
    %c8_i32_5 = arith.constant 8 : i32
    %13 = vector.broadcast %c8_i32_5 : i32 to vector<8x1xi32>
    %14 = arith.cmpi slt, %12, %13 : vector<8x1xi32>
    %c8_i32_6 = arith.constant 8 : i32
    %15 = vector.broadcast %c8_i32_6 : i32 to vector<8x1xi32>
    %16 = arith.addi %12, %15 : vector<8x1xi32>
    %c8_i32_7 = arith.constant 8 : i32
    %17 = vector.broadcast %c8_i32_7 : i32 to vector<8x1xi32>
    %18 = arith.subi %12, %17 : vector<8x1xi32>
    %19 = arith.select %14, %16, %18 : vector<8x1xi1>, vector<8x1xi32>
    %20 = tpu.iota {dimensions = array<i32: 1>} : vector<8x16xi32>
    %21 = vector.broadcast %9 : i32 to vector<8x16xi32>
    %22 = arith.addi %21, %20 : vector<8x16xi32>
    %c0_8 = arith.constant 0 : index
    %c0_9 = arith.constant 0 : index
    %23 = vector.load %arg5[%c0_8, %c0_9] : memref<8x1xf32, #tpu.memory_space<vmem>>, vector<8x1xf32>
    %24 = math.exp %7 : vector<8x16xf32>
    %cst_10 = arith.constant dense<0.000000e+00> : vector<8xf32>
    %25 = vector.multi_reduction <add>, %24, %cst_10 [1] : vector<8x16xf32> to vector<8xf32>
    %26 = vector.shape_cast %25 : vector<8xf32> to vector<8x1xf32>
    %27 = arith.addf %23, %26 : vector<8x1xf32>
    %c0_11 = arith.constant 0 : index
    %c0_12 = arith.constant 0 : index
    %28 = vector.load %arg5[%c0_11, %c0_12] : memref<8x1xf32, #tpu.memory_space<vmem>>, vector<8x1xf32>
    tpu.vector_store %arg5[%c0_11, %c0_12], %27 {strides = array<i32>} : memref<8x1xf32, #tpu.memory_space<vmem>>, vector<8x1xf32>,
    %c0_13 = arith.constant 0 : index
    %c0_14 = arith.constant 0 : index
    %29 = vector.load %arg6[%c0_13, %c0_14] : memref<8x1xf32, #tpu.memory_space<vmem>>, vector<8x1xf32>
    %30 = vector.broadcast %19 : vector<8x1xi32> to vector<8x16xi32>
    %31 = arith.cmpi eq, %22, %30 : vector<8x16xi32>
    %cst_15 = arith.constant 0.000000e+00 : f32
    %32 = vector.broadcast %cst_15 : f32 to vector<8x16xf32>
    %33 = arith.select %31, %7, %32 : vector<8x16xi1>, vector<8x16xf32>
    %cst_16 = arith.constant dense<0.000000e+00> : vector<8xf32>
    %34 = vector.multi_reduction <add>, %33, %cst_16 [1] : vector<8x16xf32> to vector<8xf32>
    %35 = vector.shape_cast %34 : vector<8xf32> to vector<8x1xf32>
    %36 = arith.addf %29, %35 : vector<8x1xf32>
    %c0_17 = arith.constant 0 : index
    %c0_18 = arith.constant 0 : index
    %37 = vector.load %arg6[%c0_17, %c0_18] : memref<8x1xf32, #tpu.memory_space<vmem>>, vector<8x1xf32>
    tpu.vector_store %arg6[%c0_17, %c0_18], %36 {strides = array<i32>} : memref<8x1xf32, #tpu.memory_space<vmem>>, vector<8x1xf32>,
    %c0_i32_19 = arith.constant 0 : i32
    %38 = arith.cmpi eq, %arg1, %c0_i32_19 : i32
    %39 = arith.extui %38 : i1 to i32
    %c0_i32_20 = arith.constant 0 : i32
    %40 = arith.cmpi ne, %39, %c0_i32_20 : i32
    scf.if %40 {
      %c0_21 = arith.constant 0 : index
      %c0_22 = arith.constant 0 : index
      %41 = vector.load %arg5[%c0_21, %c0_22] : memref<8x1xf32, #tpu.memory_space<vmem>>, vector<8x1xf32>
      %cst_23 = arith.constant 7.3890562 : f32
      %42 = vector.broadcast %cst_23 : f32 to vector<8x1xf32>
      %43 = arith.subf %41, %42 : vector<8x1xf32>
      %44 = math.log %43 : vector<8x1xf32>
      %c0_24 = arith.constant 0 : index
      %c0_25 = arith.constant 0 : index
      %45 = vector.load %arg6[%c0_24, %c0_25] : memref<8x1xf32, #tpu.memory_space<vmem>>, vector<8x1xf32>
      %46 = arith.subf %44, %45 : vector<8x1xf32>
      %47 = vector.shape_cast %46 : vector<8x1xf32> to vector<1x8x1xf32>
      %cst_26 = arith.constant dense<0.000000e+00> : vector<1xf32>
      %48 = vector.multi_reduction <add>, %47, %cst_26 [1, 2] : vector<1x8x1xf32> to vector<1xf32>
      %49 = vector.shape_cast %48 : vector<1xf32> to vector<1x1x1xf32>
      %50 = vector.extract %49[0, 0, 0] : f32 from vector<1x1x1xf32>
      %51 = vector.broadcast %50 : f32 to vector<1x1x1xf32>
      %c0_27 = arith.constant 0 : index
      %c0_28 = arith.constant 0 : index
      %c0_29 = arith.constant 0 : index
      %52 = vector.load %arg4[%c0_27, %c0_28, %c0_29] : memref<1x1x1xf32, #tpu.memory_space<vmem>>, vector<1x1x1xf32>
      tpu.vector_store %arg4[%c0_27, %c0_28, %c0_29], %51 {strides = array<i32>} : memref<1x1x1xf32, #tpu.memory_space<vmem>>, vector<1x1x1xf32>,
    } else {
    }
    return
  }
  func.func @transform_0(%arg0: i32, %arg1: i32) -> (i32, i32) {
    %c0_i32 = arith.constant 0 : i32
    %c0_i32_0 = arith.constant 0 : i32
    return %arg0, %c0_i32 : i32, i32
  }
  func.func @transform_1(%arg0: i32, %arg1: i32) -> (i32, i32) {
    %c0_i32 = arith.constant 0 : i32
    %c0_i32_0 = arith.constant 0 : i32
    return %arg1, %c0_i32 : i32, i32
  }
  func.func @transform_2(%arg0: i32, %arg1: i32) -> (i32, i32, i32) {
    %c0_i32 = arith.constant 0 : i32
    %c0_i32_0 = arith.constant 0 : i32
    %c0_i32_1 = arith.constant 0 : i32
    return %arg0, %c0_i32, %c0_i32_0 : i32, i32, i32
  }
}

</mosaic_0001>

<llo_original>
// kernel: tpu_custom_call.1
$region0: #{tpu_custom_call.1}
  #allocation0 [shape = 'u32[]', space=smem, size = 0x4, offset = 0x4, fixed_abs, tag = 'smem constant byte address 0x4 - core index']
  #allocation1 [shape = 'u32[72,128]{1,0:T(1,128)}', space=vmem, size = 0x9000, scoped, tag = 'internal scratch']
  #allocation2 [shape = 'f32[8,1]{1,0:T(8,128)}', space=vmem, size = 0x1000, scoped, tag = 'scratch operand']
  #allocation3 [shape = 'f32[8,1]{1,0:T(8,128)}', space=vmem, size = 0x1000, scoped, tag = 'scratch operand']
  %s0 = inlined_call_operand.hbm [shape: f32[16,32], index: 0, kind: input, shape index: {}]
  %s1 = inlined_call_operand.hbm [shape: f32[16,32], index: 1, kind: input, shape index: {}]
  %s2 = inlined_call_operand.vmem [shape: f32[2,1,1], index: 2, kind: output, shape index: {}]
  %s3 = sld [smem:[#allocation0]]
  $region57: #{tpu_custom_call.1} parent=0
    _
  %s5 = ssub.s32 1, %s3
  %s6 = scalar_select 0, %s5, %s3
  $region1: #{tpu_custom_call.1} parent=0
    #allocation4 [shape = 'u8[8192]{0}', space=vmem, size = 0x2000, scoped, tag = 'input window, operand 0']
    #allocation5 [shape = 's32[2]{0}', space=sflag, size = 0x8, scoped, tag = 'scoped memory for tpu_custom_call.1']
    #allocation6 [shape = 'u8[8192]{0}', space=vmem, size = 0x2000, scoped, tag = 'input window, operand 1, single buffered']
    #allocation7 [shape = 's32[1]{0}', space=sflag, size = 0x4, scoped, tag = 'scoped memory for tpu_custom_call.1']
    %7 = vsyncpa [#allocation5], 0
    %s8 = scalar_lea.sflag [#allocation5], 1
    %9 = vsyncpa %s8, 0
    %10 = vsyncpa [#allocation7], 0
    loop: start=0, step=1, limit=4
    $region2: #{tpu_custom_call.1} parent=1 // loop_pre_header
      _
    $region3: #{tpu_custom_call.1} parent=1 // loop_header
      %s12 = sphi 0, %s16
      %p13 = scmp.ge.s32.totalorder %s12, 4
      %s19 = sphi 0, %s31
      %s20 = sphi 0, %s27
      %s21 = sphi 0, %s19
      %s22 = sphi 0, %s20
      %s23 = sphi 0, %s21
      %s24 = sphi 0, %s22
      %s34 = sphi 0, %s36
      %s37 = sphi 0, %s34
      %s38 = sphi 0, %s37
      %s54 = sphi 0, %s38
      %s60 = sphi 0, %s62
      %s63 = sphi 0, %s60
      %s64 = sphi 0, %s63
      %s80 = sphi 0, %s64
      %s86 = sphi 0, %s88
      %s89 = sphi 0, %s86
      %s90 = sphi 0, %s89
      %s106 = sphi 0, %s90
    $region4: #{tpu_custom_call.1} parent=1 // loop_header_branch
      %15 = sbr.rel (%p13) target = $region8
    $region5: #{tpu_custom_call.1} parent=1 // loop_body
      %s17 = ssub.s32 %s12, 1
      %s18 = ssub.s32 %s12, 2
      %s25 = sadd.s32 1, %s20
      %p26 = scmp.ge.s32.totalorder %s25, 1
      %s27 = scalar_select %p26, 0, %s25
      %s28 = sadd.s32 1, %s19
      %s29 = scalar_select %p26, %s28, %s19
      %p30 = scmp.ge.s32.totalorder %s29, 2
      %s31 = scalar_select %p30, 0, %s29
      %s32 = ssub.s32 %s19, %s31
      %p33 = scmp.eq.s32.totalorder %s32, 0
      %s35 = sadd.s32 %s34, 1
      %s36 = scalar_select %p33, %s34, %s35
      %p39 = pneg %p33
      %p40 = scmp.eq.s32.totalorder %s12, 1
      %p41 = por %p39, %p40
      %p42 = scmp.ne.s32.totalorder %s34, %s37
      %p43 = scmp.eq.s32.totalorder %s12, 0
      %p44 = por %p42, %p43
      %p45 = scmp.ne.s32.totalorder %s34, %s37
      %p46 = scmp.eq.s32.totalorder %s17, 1
      %p47 = por %p45, %p46
      %p48 = scmp.ne.s32.totalorder %s37, %s38
      %p49 = scmp.eq.s32.totalorder %s17, 0
      %p50 = por %p48, %p49
      %p51 = scmp.ne.s32.totalorder %s37, %s38
      %p52 = scmp.eq.s32.totalorder %s18, 1
      %p53 = por %p51, %p52
      %p55 = scmp.ne.s32.totalorder %s38, %s54
      %p56 = scmp.eq.s32.totalorder %s18, 0
      %p57 = por %p55, %p56
      %s58 = ssub.s32 %s20, %s27
      %p59 = scmp.eq.s32.totalorder %s58, 0
      %s61 = sadd.s32 %s60, 1
      %s62 = scalar_select %p59, %s60, %s61
      %p65 = pneg %p59
      %p66 = scmp.eq.s32.totalorder %s12, 1
      %p67 = por %p65, %p66
      %p68 = scmp.ne.s32.totalorder %s60, %s63
      %p69 = scmp.eq.s32.totalorder %s12, 0
      %p70 = por %p68, %p69
      %p71 = scmp.ne.s32.totalorder %s60, %s63
      %p72 = scmp.eq.s32.totalorder %s17, 1
      %p73 = por %p71, %p72
      %p74 = scmp.ne.s32.totalorder %s63, %s64
      %p75 = scmp.eq.s32.totalorder %s17, 0
      %p76 = por %p74, %p75
      %p77 = scmp.ne.s32.totalorder %s63, %s64
      %p78 = scmp.eq.s32.totalorder %s18, 1
      %p79 = por %p77, %p78
      %p81 = scmp.ne.s32.totalorder %s64, %s80
      %p82 = scmp.eq.s32.totalorder %s18, 0
      %p83 = por %p81, %p82
      %s84 = ssub.s32 %s19, %s31
      %p85 = scmp.eq.s32.totalorder %s84, 0
      %s87 = sadd.s32 %s86, 1
      %s88 = scalar_select %p85, %s86, %s87
      %p91 = pneg %p85
      %p92 = scmp.eq.s32.totalorder %s12, 1
      %p93 = por %p91, %p92
      %p94 = scmp.ne.s32.totalorder %s86, %s89
      %p95 = scmp.eq.s32.totalorder %s12, 0
      %p96 = por %p94, %p95
      %p97 = scmp.ne.s32.totalorder %s86, %s89
      %p98 = scmp.eq.s32.totalorder %s17, 1
      %p99 = por %p97, %p98
      %p100 = scmp.ne.s32.totalorder %s89, %s90
      %p101 = scmp.eq.s32.totalorder %s17, 0
      %p102 = por %p100, %p101
      %p103 = scmp.ne.s32.totalorder %s89, %s90
      %p104 = scmp.eq.s32.totalorder %s18, 1
      %p105 = por %p103, %p104
      %p107 = scmp.ne.s32.totalorder %s90, %s106
      %p108 = scmp.eq.s32.totalorder %s18, 0
      %p109 = por %p107, %p108
      %p110 = scmp.le.s32.totalorder 1, %s12
      %p111 = scmp.lt.s32.totalorder %s12, 3
      %p112 = pnand %p110, %p111
      %p113 = pneg %p112
      // Predicated region
      $region9: #{tpu_custom_call.1} parent=5 // pred_check
        _
      $region10: #{tpu_custom_call.1} parent=5 // pred_check_branch
        %115 = sbr.rel (%p112) target = $region12
      $region11: #{tpu_custom_call.1} parent=5 // pred_region
        %s116 = ssub.s32 %s12, 1
        // Predicated region
        $region13: #{tpu_custom_call.1} parent=11 // pred_check
          %p117 = pneg %p76
        $region14: #{tpu_custom_call.1} parent=11 // pred_check_branch
          %119 = sbr.rel (%p117) target = $region16
        $region15: #{tpu_custom_call.1} parent=11 // pred_region
          %s120 = smul.u32 2, %s22
          %122 = vsyncadd [#allocation7], 0
          %s123 = smul.addr %s120, 8
          %s124 = scalar_lea.hbm %s1, %s123
          %s125 = sshll.u32 %s124, 4
          %s126 = int_to_ptr.hbm [resolvable:$true] %s125
          %s127 = sshll.u32 [#allocation6], 4
          %s128 = int_to_ptr.vmem [resolvable:$true] %s127
          %133 = dma.hbm_to_vmem [thread:$0]  %s126, 256, %s128, [#allocation7], 128, 128, 8
        $region16: #{tpu_custom_call.1} parent=11 // pred_fallthru
          _
      $region12: #{tpu_custom_call.1} parent=5 // pred_fallthru
        _
      %p134 = scmp.lt.s32.totalorder %s12, 2
      // Predicated region
      $region17: #{tpu_custom_call.1} parent=5 // pred_check
        %p135 = pneg %p134
      $region18: #{tpu_custom_call.1} parent=5 // pred_check_branch
        %137 = sbr.rel (%p135) target = $region20
      $region19: #{tpu_custom_call.1} parent=5 // pred_region
        // Predicated region
        $region21: #{tpu_custom_call.1} parent=19 // pred_check
          %p138 = pneg %p44
        $region22: #{tpu_custom_call.1} parent=19 // pred_check_branch
          %140 = sbr.rel (%p138) target = $region24
        $region23: #{tpu_custom_call.1} parent=19 // pred_region
          %s141 = sand.u32 %s34, 1
          %s142 = scalar_lea.sflag [#allocation5], %s141
          %s143 = sand.u32 %s34, 1
          %s144 = smul.addr %s143, 8
          %s145 = scalar_lea.vmem [#allocation4], %s144
          %147 = vsyncadd %s142, 0
          %s148 = smul.addr %s19, 8
          %s149 = scalar_lea.hbm %s0, %s148
          %s151 = sshll.u32 %s149, 4
          %s152 = int_to_ptr.hbm [resolvable:$true] %s151
          %s153 = sshll.u32 %s145, 4
          %s154 = int_to_ptr.vmem [resolvable:$true] %s153
          %156 = dma.hbm_to_vmem [thread:$0]  %s152, 128, %s154, %s142
        $region24: #{tpu_custom_call.1} parent=19 // pred_fallthru
          _
      $region20: #{tpu_custom_call.1} parent=5 // pred_fallthru
        _
      %p157 = scmp.le.s32.totalorder 1, %s12
      %p158 = scmp.lt.s32.totalorder %s12, 3
      %p159 = pnand %p157, %p158
      %p160 = pneg %p159
      // Predicated region
      $region25: #{tpu_custom_call.1} parent=5 // pred_check
        _
      $region26: #{tpu_custom_call.1} parent=5 // pred_check_branch
        %162 = sbr.rel (%p159) target = $region28
      $region27: #{tpu_custom_call.1} parent=5 // pred_region
        %s163 = ssub.s32 %s12, 1
        %s164 = sand.u32 %s37, 1
        %s165 = scalar_lea.sflag [#allocation5], %s164
        %s166 = sand.u32 %s37, 1
        %s167 = smul.addr %s166, 8
        %s168 = scalar_lea.vmem [#allocation4], %s167
        // Predicated region
        $region29: #{tpu_custom_call.1} parent=27 // pred_check
          %p169 = pneg %p50
        $region30: #{tpu_custom_call.1} parent=27 // pred_check_branch
          %171 = sbr.rel (%p169) target = $region32
        $region31: #{tpu_custom_call.1} parent=27 // pred_region
          %173 = dma.done %s165, 128
        $region32: #{tpu_custom_call.1} parent=27 // pred_fallthru
          _
        // Predicated region
        $region33: #{tpu_custom_call.1} parent=27 // pred_check
          %p174 = pneg %p76
        $region34: #{tpu_custom_call.1} parent=27 // pred_check_branch
          %176 = sbr.rel (%p174) target = $region36
        $region35: #{tpu_custom_call.1} parent=27 // pred_region
          %178 = dma.done [#allocation7], 256
        $region36: #{tpu_custom_call.1} parent=27 // pred_fallthru
          _
        %s179 = sand.u32 %s37, 1
        %s180 = scalar_lea.sflag [#allocation5], %s179
        %s181 = sand.u32 %s37, 1
        %s182 = smul.addr %s181, 8
        %s183 = scalar_lea.vmem [#allocation4], %s182
        %p184 = pneg %p50
        %p185 = pneg %p47
        %p186 = pneg %p76
        %p187 = pneg %p73
        %p188 = pneg %p102
        %p189 = pneg %p99
        %p190 = scmp.lt.s32.totalorder %s21, 1
        %s191 = scalar_select %p190, %s21, 1
        %s192 = scalar_lea.vmem %s2, %s191
        %s193 = smul.u32 2, %s22
        %p194 = scmp.lt.s32.totalorder %s21, 1
        %s195 = scalar_select %p194, %s21, 1
        %s196 = scalar_lea.vmem %s2, %s195
        %p197 = scmp.eq.s32.totalorder %s22, 0
        // Predicated region
        $region37: #{tpu_custom_call.1} parent=27 // pred_check
          %p198 = pneg %p197
        $region38: #{tpu_custom_call.1} parent=27 // pred_check_branch
          %200 = sbr.rel (%p198) target = $region40
        $region39: #{tpu_custom_call.1} parent=27 // pred_region
          %vm201 = vcmask 7168
          %202 = vst.msk [vmem:[#allocation2] sm:$0xff] %vm201, 0.0
          %203 = vst.msk [vmem:[#allocation3] sm:$0xff] %vm201, 0.0
        $region40: #{tpu_custom_call.1} parent=27 // pred_fallthru
          _
        %v204 = vld [vmem:[%s168] sm:$0xff]
        %v205 = vld [vmem:[#allocation6] sm:$0xff]
        %v206 = vld [vmem:[#allocation6 + $0x8] sm:$0xff]
        %vm207 = vcmask 261120
        %v209 = vsel %vm207, %v204, 0
        %v212 = vsel %vm207, %v205, 0
        %v215 = vsel %vm207, %v206, 0
        %217 = vmatpush.xpose.msra.mxu0 0.0
        %218 = vmatpush.xpose.msra.mxu0 0.0
        %219 = vmatpush.xpose.msra.mxu0 0.0
        %220 = vmatpush.xpose.msra.mxu0 0.0
        %221 = vmatpush.xpose.msra.mxu0 0.0
        %222 = vmatpush.xpose.msra.mxu0 0.0
        %223 = vmatpush.xpose.msra.mxu0 0.0
        %224 = vmatpush.xpose.msra.mxu0 0.0
        %225 = vmatpush.xpose.msra.mxu0 0.0
        %226 = vmatpush.xpose.msra.mxu0 0.0
        %227 = vmatpush.xpose.msra.mxu0 0.0
        %228 = vmatpush.xpose.msra.mxu0 0.0
        %229 = vmatpush.xpose.msra.mxu0 0.0
        %230 = vmatpush.xpose.msra.mxu0 0.0
        %231 = vmatpush.xpose.msra.mxu0 %v215
        %232 = vmatpush.xpose.msra.mxu0 %v212
        %233 = vmatmul.f32.gmra.mxu0 %v209
        %v234 = vpop.f32.mrf.mxu0
        %v235 = vadd.f32 0.0, %v234
        %236 = vdwg.mxu0
        %v237 = vmul.f32 %v235, 2.0
        %s238 = smul.u32 %s21, 8
        %s239 = smul.u32 %s22, 16
        %v240 = vlaneseq
        %v241 = vshrl.u32 %v240, 7
        %v242 = vstv %s238
        %v243 = vadd.s32 %v242, %v241
        %vm244 = vcmp.lt.s32.totalorder %v243, 8
        %v245 = vadd.s32 %v243, 8
        %v246 = vsub.s32 %v243, 8
        %v247 = vsel %vm244, %v245, %v246
        %v248 = vlaneseq
        %v249 = vand.u32 %v248, 127
        %v250 = vstv %s239
        %v251 = vadd.s32 %v250, %v249
        %v252 = vld [vmem:[#allocation2] sm:$0xff]
        %v253 = vmul.f32 %v237, 1.442695
        %v254 = vpow.pop %v253
        %vm255 = vcmask 130048
        %v256 = vsel %vm255, %v254, 0.0
        %257 = vadd.xlane.f32.xlu0 %v256
        %v258 = vpop.xlane.xlu0 %257
        %v259 = vadd.f32 %v252, %v258
        %vm260 = vcmask 7168
        %261 = vst.msk [vmem:[#allocation2] sm:$0xff] %vm260, %v259
        %v262 = vld [vmem:[#allocation3] sm:$0xff]
        %vm263 = vcmp.eq.s32.totalorder %v251, %v247
        %v264 = vsel %vm263, %v237, 0.0
        %v265 = vsel %vm255, %v264, 0.0
        %266 = vadd.xlane.f32.xlu0 %v265
        %v267 = vpop.xlane.xlu0 %266
        %v268 = vadd.f32 %v262, %v267
        %269 = vst.msk [vmem:[#allocation3] sm:$0xff] %vm260, %v268
        // Predicated region
        $region41: #{tpu_custom_call.1} parent=27 // pred_check
          %p270 = pneg %p197
        $region42: #{tpu_custom_call.1} parent=27 // pred_check_branch
          %272 = sbr.rel (%p270) target = $region44
        $region43: #{tpu_custom_call.1} parent=27 // pred_region
          %v273 = vld [vmem:[#allocation2] sm:$0xff]
          %v274 = vsub.f32 %v273, 7.389056
          %v275 = vlog2.pop %v274
          %v276 = vmul.f32 %v275, 0.6931472
          %v277 = vld [vmem:[#allocation3] sm:$0xff]
          %v278 = vsub.f32 %v276, %v277
          %v279 = vsel %vm260, %v278, 0.0
          %280 = vadd.xlane.f32.xlu0 %v279
          %v281 = vpop.xlane.xlu0 %280
          %v282 = vrot.slane %v281, 4
          %v283 = vadd.f32 %v281, %v282
          %v284 = vrot.slane %v283, 2
          %v285 = vadd.f32 %v283, %v284
          %v286 = vrot.slane %v285, 1
          %v287 = vadd.f32 %v285, %v286
          %s288 = vtos %v287
          %v289 = vstv %s288
          %vm290 = vcmask 0
          %291 = vst.msk [vmem:[%s196] sm:$0x1] %vm290, %v289
        $region44: #{tpu_custom_call.1} parent=27 // pred_fallthru
          _
        %p292 = scmp.lt.s32.totalorder %s21, 1
        %s293 = scalar_select %p292, %s21, 1
        %s294 = scalar_lea.vmem %s2, %s293
        // Predicated region
        $region45: #{tpu_custom_call.1} parent=27 // pred_check
          %p295 = pneg %p99
        $region46: #{tpu_custom_call.1} parent=27 // pred_check_branch
          %297 = sbr.rel (%p295) target = $region48
        $region47: #{tpu_custom_call.1} parent=27 // pred_region
          _
        $region48: #{tpu_custom_call.1} parent=27 // pred_fallthru
          _
      $region28: #{tpu_custom_call.1} parent=5 // pred_fallthru
        _
      %p298 = scmp.le.s32.totalorder 2, %s12
      // Predicated region
      $region49: #{tpu_custom_call.1} parent=5 // pred_check
        %p299 = pneg %p298
      $region50: #{tpu_custom_call.1} parent=5 // pred_check_branch
        %301 = sbr.rel (%p299) target = $region52
      $region51: #{tpu_custom_call.1} parent=5 // pred_region
        %s302 = ssub.s32 %s12, 2
        // Predicated region
        $region53: #{tpu_custom_call.1} parent=51 // pred_check
          %p303 = pneg %p105
        $region54: #{tpu_custom_call.1} parent=51 // pred_check_branch
          %305 = sbr.rel (%p303) target = $region56
        $region55: #{tpu_custom_call.1} parent=51 // pred_region
          %p306 = scmp.lt.s32.totalorder %s23, 1
          %s307 = scalar_select %p306, %s23, 1
          %s308 = scalar_lea.vmem %s2, %s307
        $region56: #{tpu_custom_call.1} parent=51 // pred_fallthru
          _
      $region52: #{tpu_custom_call.1} parent=5 // pred_fallthru
        _
    $region6: #{tpu_custom_call.1} parent=1 // loop_footer
      %s16 = sadd.s32 1, %s12
    $region7: #{tpu_custom_call.1} parent=1 // loop_footer_branch
      %11 = sbr.rel target = $region3
    $region8: #{tpu_custom_call.1} parent=1 // loop_exit
      _
    %309 = vsyncpa [#allocation5], 1
    %s310 = scalar_lea.sflag [#allocation5], 1
    %311 = vsyncpa %s310, 1
    %312 = vsyncpa [#allocation7], 1

</llo_original>
